<compile_context>
chip_gen: v5e
topology: v5e:2x2
jax: 0.10.0
libtpu: 0.0.40
codegen_flags: <defaults>
</compile_context>

<pallas_src>
import functools

import jax
import jax.numpy as jnp
from jax.experimental import pallas as pl
from jax.experimental.pallas import tpu as pltpu

_LANE = 128   # vreg lane width
_SUB = 8      # vreg sublane width


def _round_up(n, m):
    return ((n + m - 1) // m) * m


def _fused_mlp_kernel(*refs, num_hidden, training):
    """One grid step pushes one batch tile through the ENTIRE network.

    refs = (x, w0, b0, ..., w_{H-1}, b_{H-1}, w_outT, b_out,
            [mask_0 .. mask_{H-1} if training], o)
    Hidden weights are zero-padded to 128 lanes, so padded activation lanes
    stay exactly zero through ReLU / dropout and the math is exact.
    """
    x_ref = refs[0]
    o_ref = refs[-1]
    n_wb = 2 * (num_hidden + 1)
    wb = refs[1:1 + n_wb]
    masks = refs[1 + n_wb:-1]          # empty tuple in eval mode

    x = x_ref[...]
    for li in range(num_hidden):
        w = wb[2 * li][...]
        b = wb[2 * li + 1][...]
        x = jnp.dot(x, w, preferred_element_type=jnp.float32) + b
        x = jnp.maximum(x, 0.0)
        if training:
            x = x * masks[li][...]     # mask already holds 0 or 1/(1-p)

    w_oT = wb[2 * num_hidden][...]     # (out_dim, d_last_padded), pre-transposed
    b_o = wb[2 * num_hidden + 1][...]  # (1, out_dim)
    if w_oT.shape[0] == 1:
        # out_dim == 1: VPU multiply + XLU lane-reduce instead of an N=1 matmul.
        y = jnp.sum(x * w_oT, axis=-1, keepdims=True) + b_o
    else:
        # General out_dim: rhs-transposed matmul (same pattern as q @ k.T).
        y = jax.lax.dot_general(
            x, w_oT, dimension_numbers=(((1,), (1,)), ((), ())),
            preferred_element_type=jnp.float32) + b_o
    o_ref[...] = jax.nn.sigmoid(y).astype(o_ref.dtype)


def prepare_params(params):
    """Pad/transpose weights ONCE (hoisted out of the per-call graph).

    Hidden widths are zero-padded to 128 lanes; layer 0 keeps its real fan-in
    (the raw input feature dim) and the output layer keeps its real fan-out and
    is stored transposed as (out_dim, d_last_padded).
    """
    num_hidden = len(params) - 1
    prepared = []
    for li, (w, b) in enumerate(params):
        din, dout = w.shape
        din_p = din if li == 0 else _round_up(din, _LANE)
        dout_p = dout if li == num_hidden else _round_up(dout, _LANE)
        wp = jnp.pad(w.astype(jnp.float32),
                     ((0, din_p - din), (0, dout_p - dout)))
        bp = jnp.pad(b.astype(jnp.float32).reshape(1, -1),
                     ((0, 0), (0, dout_p - dout)))
        if li == num_hidden:
            wp = wp.T                            # (out_dim, d_last_padded)
        prepared.append((wp, bp))
    return prepared


def make_dropout_masks(key, batch, prepared_params, drop_p):
    """Inverted-dropout scale masks (0 or 1/(1-p)) at the padded hidden widths.

    Generated host-side with jax.random (no TPU-only PRNG primitive needed in
    the kernel); padded lanes only ever multiply exactly-zero activations.
    """
    num_hidden = len(prepared_params) - 1
    keys = jax.random.split(key, max(num_hidden, 1))
    masks = []
    for li in range(num_hidden):
        width = prepared_params[li][0].shape[1]
        keep = jax.random.uniform(keys[li], (batch, width)) >= drop_p
        masks.append(keep.astype(jnp.float32) * (1.0 / (1.0 - drop_p)))
    return masks


def network_forward(x, prepared_params, *, training=False, dropout_masks=None,
                    batch_tile=512):
    """Single fused Pallas call for the whole `Network` forward pass."""
    B, din = x.shape
    num_hidden = len(prepared_params) - 1
    out_dim = prepared_params[-1][0].shape[0]   # output weight stored transposed

    # Batch tile: as large as possible (per-grid-step overhead dominates this
    # tiny net) but clamped so mid-sized batches still get >= 2 grid steps
    # (keeps both v7x TensorCores busy); always a multiple of the 8-row sublane.
    if B <= _SUB:
        b_tile = _SUB
    else:
        b_tile = max(_SUB, min(batch_tile, _round_up(pl.cdiv(B, 2), _SUB)))
    grid = (pl.cdiv(B, b_tile),)

    x = x.astype(jnp.float32)

    ins = [x]
    # Din equals the full array dim, so an unpadded (b_tile, Din) block is legal.
    in_specs = [pl.BlockSpec((b_tile, din), lambda i: (i, 0))]
    for wp, bp in prepared_params:
        ins += [wp, bp]
        # Constant block index -> weights/biases stay VMEM-resident across the
        # batch grid (no per-tile re-DMA).
        in_specs += [
            pl.BlockSpec(tuple(wp.shape), lambda i: (0, 0)),
            pl.BlockSpec(tuple(bp.shape), lambda i: (0, 0)),
        ]
    if training:
        assert dropout_masks is not None and len(dropout_masks) == num_hidden
        for m in dropout_masks:
            ins.append(m.astype(jnp.float32))
            in_specs.append(pl.BlockSpec((b_tile, m.shape[1]), lambda i: (i, 0)))

    out_spec = pl.BlockSpec((b_tile, out_dim), lambda i: (i, 0))

    kernel = functools.partial(
        _fused_mlp_kernel, num_hidden=num_hidden, training=bool(training))

    return pl.pallas_call(
        kernel,
        out_shape=jax.ShapeDtypeStruct((B, out_dim), jnp.float32),
        grid_spec=pltpu.PrefetchScalarGridSpec(
            num_scalar_prefetch=0,
            grid=grid,
            in_specs=in_specs,
            out_specs=out_spec,
        ),
        compiler_params=pltpu.CompilerParams(
            dimension_semantics=("parallel",),
        ),
    )(*ins)


def init_params(key, input_size, output_size, hidden_layers):
    """Matches torch.nn.Linear default init: U(-1/sqrt(fan_in), 1/sqrt(fan_in)).
    Weights stored as [in_features, out_features] (transpose of torch layout)."""
    sizes = [input_size] + list(hidden_layers) + [output_size]
    params = []
    for fan_in, fan_out in zip(sizes[:-1], sizes[1:]):
        key, kw, kb = jax.random.split(key, 3)
        bound = 1.0 / jnp.sqrt(jnp.float32(fan_in))
        w = jax.random.uniform(kw, (fan_in, fan_out), jnp.float32,
                               minval=-bound, maxval=bound)
        b = jax.random.uniform(kb, (fan_out,), jnp.float32,
                               minval=-bound, maxval=bound)
        params.append((w, b))
    return params


def _reference_forward(x, params, *, masks=None):
    """Plain-JAX reference (eval mode, or training mode given the same masks)."""
    h = x
    for li, (w, b) in enumerate(params[:-1]):
        h = jnp.maximum(jnp.dot(h, w, precision=jax.lax.Precision.HIGHEST) + b, 0.0)
        if masks is not None:
            h = h * masks[li][:, : h.shape[1]]
    w_o, b_o = params[-1]
    return jax.nn.sigmoid(jnp.dot(h, w_o, precision=jax.lax.Precision.HIGHEST) + b_o)


if __name__ == "__main__":
    # Module-consistent small shapes: input_size=32, hidden_layers=[64, 32],
    # output_size=1 (binary logistic output).
    input_size = 32
    hidden_layers = [64, 32]
    output_size = 1
    drop_p = 0.5

    key = jax.random.PRNGKey(0)
    key_x, key_x2, key_p, key_d = jax.random.split(key, 4)
    params = init_params(key_p, input_size, output_size, hidden_layers)
    prepared = prepare_params(params)   # padded once, reused across all calls

    # --- Case 1: small batch (single grid step), eval mode, exact check. ---
    batch = 8
    x = jax.random.normal(key_x, (batch, input_size), dtype=jnp.float32)
    out = jax.block_until_ready(network_forward(x, prepared, training=False))
    ref = _reference_forward(x, params)
    assert out.shape == (batch, output_size)
    assert jnp.allclose(out, ref, atol=2e-5, rtol=2e-5)

    # --- Case 2: ragged batch -> multiple grid steps + clipped last tile. ---
    batch2 = 300
    x2 = jax.random.normal(key_x2, (batch2, input_size), dtype=jnp.float32)
    out2 = jax.block_until_ready(network_forward(x2, prepared, training=False))
    ref2 = _reference_forward(x2, params)
    assert out2.shape == (batch2, output_size)
    assert jnp.allclose(out2, ref2, atol=2e-5, rtol=2e-5)

    # --- Case 3: training mode -- same dropout masks fed to kernel and ref. ---
    masks = make_dropout_masks(key_d, batch2, prepared, drop_p)
    out_tr = jax.block_until_ready(
        network_forward(x2, prepared, training=True, dropout_masks=masks))
    ref_tr = _reference_forward(x2, params, masks=masks)
    assert out_tr.shape == (batch2, output_size)
    assert bool(jnp.all(jnp.isfinite(out_tr)))
    assert jnp.allclose(out_tr, ref_tr, atol=2e-5, rtol=2e-5)

    print("KERNEL_OK")
</pallas_src>

<mosaic_0001>
module attributes {stable_mosaic.version = 11 : i64} {
  func.func @_fused_mlp_kernel(%arg0: i32, %arg1: memref<8x32xf32, #tpu.memory_space<vmem>>, %arg2: memref<32x128xf32, #tpu.memory_space<vmem>>, %arg3: memref<1x128xf32, #tpu.memory_space<vmem>>, %arg4: memref<128x128xf32, #tpu.memory_space<vmem>>, %arg5: memref<1x128xf32, #tpu.memory_space<vmem>>, %arg6: memref<1x128xf32, #tpu.memory_space<vmem>>, %arg7: memref<1x1xf32, #tpu.memory_space<vmem>>, %arg8: memref<8x1xf32, #tpu.memory_space<vmem>>) attributes {dimension_semantics = [#tpu.dimension_semantics<parallel>], iteration_bounds = array<i64: 1>, scalar_prefetch = 0 : i64, scratch_operands = 0 : i64, tpu.core_type = #tpu.core_type<tc>, window_params = [{transform_indices = @transform_0, window_bounds = array<i64: 8, 32>}, {pipeline_mode = #tpu.pipeline_mode<synchronous>, transform_indices = @transform_1, window_bounds = array<i64: 32, 128>}, {pipeline_mode = #tpu.pipeline_mode<synchronous>, transform_indices = @transform_2, window_bounds = array<i64: 1, 128>}, {pipeline_mode = #tpu.pipeline_mode<synchronous>, transform_indices = @transform_3, window_bounds = array<i64: 128, 128>}, {pipeline_mode = #tpu.pipeline_mode<synchronous>, transform_indices = @transform_4, window_bounds = array<i64: 1, 128>}, {pipeline_mode = #tpu.pipeline_mode<synchronous>, transform_indices = @transform_5, window_bounds = array<i64: 1, 128>}, {pipeline_mode = #tpu.pipeline_mode<synchronous>, transform_indices = @transform_6, window_bounds = array<i64: 1, 1>}, {transform_indices = @transform_7, window_bounds = array<i64: 8, 1>}]} {
    %c0 = arith.constant 0 : index
    %c0_0 = arith.constant 0 : index
    %0 = vector.load %arg1[%c0, %c0_0] : memref<8x32xf32, #tpu.memory_space<vmem>>, vector<8x32xf32>
    %c0_1 = arith.constant 0 : index
    %c0_2 = arith.constant 0 : index
    %1 = vector.load %arg2[%c0_1, %c0_2] : memref<32x128xf32, #tpu.memory_space<vmem>>, vector<32x128xf32>
    %c0_3 = arith.constant 0 : index
    %c0_4 = arith.constant 0 : index
    %2 = vector.load %arg3[%c0_3, %c0_4] : memref<1x128xf32, #tpu.memory_space<vmem>>, vector<1x128xf32>
    %cst = arith.constant dense<0.000000e+00> : vector<8x128xf32>
    %3 = tpu.matmul %0, %1, %cst {dimension_numbers = #tpu.dot_dimension_numbers<[1], [0], [0], [1], [0, 0, 1, 1], [], []>} : vector<8x32xf32>, vector<32x128xf32>, vector<8x128xf32> -> vector<8x128xf32>
    %4 = vector.broadcast %2 : vector<1x128xf32> to vector<8x128xf32>
    %5 = arith.addf %3, %4 : vector<8x128xf32>
    %cst_5 = arith.constant 0.000000e+00 : f32
    %6 = vector.broadcast %cst_5 : f32 to vector<8x128xf32>
    %7 = arith.maximumf %5, %6 : vector<8x128xf32>
    %c0_6 = arith.constant 0 : index
    %c0_7 = arith.constant 0 : index
    %8 = vector.load %arg4[%c0_6, %c0_7] : memref<128x128xf32, #tpu.memory_space<vmem>>, vector<128x128xf32>
    %c0_8 = arith.constant 0 : index
    %c0_9 = arith.constant 0 : index
    %9 = vector.load %arg5[%c0_8, %c0_9] : memref<1x128xf32, #tpu.memory_space<vmem>>, vector<1x128xf32>
    %cst_10 = arith.constant dense<0.000000e+00> : vector<8x128xf32>
    %10 = tpu.matmul %7, %8, %cst_10 {dimension_numbers = #tpu.dot_dimension_numbers<[1], [0], [0], [1], [0, 0, 1, 1], [], []>} : vector<8x128xf32>, vector<128x128xf32>, vector<8x128xf32> -> vector<8x128xf32>
    %11 = vector.broadcast %9 : vector<1x128xf32> to vector<8x128xf32>
    %12 = arith.addf %10, %11 : vector<8x128xf32>
    %cst_11 = arith.constant 0.000000e+00 : f32
    %13 = vector.broadcast %cst_11 : f32 to vector<8x128xf32>
    %14 = arith.maximumf %12, %13 : vector<8x128xf32>
    %c0_12 = arith.constant 0 : index
    %c0_13 = arith.constant 0 : index
    %15 = vector.load %arg6[%c0_12, %c0_13] : memref<1x128xf32, #tpu.memory_space<vmem>>, vector<1x128xf32>
    %c0_14 = arith.constant 0 : index
    %c0_15 = arith.constant 0 : index
    %16 = vector.load %arg7[%c0_14, %c0_15] : memref<1x1xf32, #tpu.memory_space<vmem>>, vector<1x1xf32>
    %17 = vector.broadcast %15 : vector<1x128xf32> to vector<8x128xf32>
    %18 = arith.mulf %14, %17 : vector<8x128xf32>
    %cst_16 = arith.constant dense<0.000000e+00> : vector<8xf32>
    %19 = vector.multi_reduction <add>, %18, %cst_16 [1] : vector<8x128xf32> to vector<8xf32>
    %20 = vector.shape_cast %19 : vector<8xf32> to vector<8x1xf32>
    %21 = vector.broadcast %16 : vector<1x1xf32> to vector<8x1xf32>
    %22 = arith.addf %20, %21 : vector<8x1xf32>
    %23 = arith.negf %22 : vector<8x1xf32>
    %24 = math.exp %23 : vector<8x1xf32>
    %cst_17 = arith.constant 1.000000e+00 : f32
    %25 = vector.broadcast %cst_17 : f32 to vector<8x1xf32>
    %26 = arith.addf %25, %24 : vector<8x1xf32>
    %27 = arith.divf %25, %26 : vector<8x1xf32>
    %c0_18 = arith.constant 0 : index
    %c0_19 = arith.constant 0 : index
    %28 = vector.load %arg8[%c0_18, %c0_19] : memref<8x1xf32, #tpu.memory_space<vmem>>, vector<8x1xf32>
    tpu.vector_store %arg8[%c0_18, %c0_19], %27 {strides = array<i32>} : memref<8x1xf32, #tpu.memory_space<vmem>>, vector<8x1xf32>,
    return
  }
  func.func @transform_0(%arg0: i32) -> (i32, i32) {
    %c0_i32 = arith.constant 0 : i32
    %c0_i32_0 = arith.constant 0 : i32
    return %arg0, %c0_i32 : i32, i32
  }
  func.func @transform_1(%arg0: i32) -> (i32, i32) {
    %c0_i32 = arith.constant 0 : i32
    %c0_i32_0 = arith.constant 0 : i32
    %c0_i32_1 = arith.constant 0 : i32
    return %c0_i32, %c0_i32_0 : i32, i32
  }
  func.func @transform_2(%arg0: i32) -> (i32, i32) {
    %c0_i32 = arith.constant 0 : i32
    %c0_i32_0 = arith.constant 0 : i32
    %c0_i32_1 = arith.constant 0 : i32
    return %c0_i32, %c0_i32_0 : i32, i32
  }
  func.func @transform_3(%arg0: i32) -> (i32, i32) {
    %c0_i32 = arith.constant 0 : i32
    %c0_i32_0 = arith.constant 0 : i32
    %c0_i32_1 = arith.constant 0 : i32
    return %c0_i32, %c0_i32_0 : i32, i32
  }
  func.func @transform_4(%arg0: i32) -> (i32, i32) {
    %c0_i32 = arith.constant 0 : i32
    %c0_i32_0 = arith.constant 0 : i32
    %c0_i32_1 = arith.constant 0 : i32
    return %c0_i32, %c0_i32_0 : i32, i32
  }
  func.func @transform_5(%arg0: i32) -> (i32, i32) {
    %c0_i32 = arith.constant 0 : i32
    %c0_i32_0 = arith.constant 0 : i32
    %c0_i32_1 = arith.constant 0 : i32
    return %c0_i32, %c0_i32_0 : i32, i32
  }
  func.func @transform_6(%arg0: i32) -> (i32, i32) {
    %c0_i32 = arith.constant 0 : i32
    %c0_i32_0 = arith.constant 0 : i32
    %c0_i32_1 = arith.constant 0 : i32
    return %c0_i32, %c0_i32_0 : i32, i32
  }
  func.func @transform_7(%arg0: i32) -> (i32, i32) {
    %c0_i32 = arith.constant 0 : i32
    %c0_i32_0 = arith.constant 0 : i32
    return %arg0, %c0_i32 : i32, i32
  }
}

</mosaic_0001>

<llo_original>
// kernel: tpu_custom_call.1
$region0: #{tpu_custom_call.1}
  #allocation0 [shape = 'u32[]', space=smem, size = 0x4, offset = 0x4, fixed_abs, tag = 'smem constant byte address 0x4 - core index']
  #allocation1 [shape = 'u32[72,128]{1,0:T(1,128)}', space=vmem, size = 0x9000, scoped, tag = 'internal scratch']
  #allocation2 [shape = 'f32[1,1]{1,0:T(1,128)S(1)}', space=vmem, size = 0x200, scoped, tag = 'scoped memory for tpu_custom_call.1']
  %s0 = inlined_call_operand.hbm [shape: f32[8,32], index: 0, kind: input, shape index: {}]
  %s1 = inlined_call_operand.hbm [shape: f32[32,128], index: 1, kind: input, shape index: {}]
  %s2 = inlined_call_operand.vmem [shape: f32[1,128], index: 2, kind: input, shape index: {}]
  %s3 = inlined_call_operand.hbm [shape: f32[128,128], index: 3, kind: input, shape index: {}]
  %s4 = inlined_call_operand.vmem [shape: f32[1,128], index: 4, kind: input, shape index: {}]
  %s5 = inlined_call_operand.vmem [shape: f32[1,128], index: 5, kind: input, shape index: {}]
  %s6 = inlined_call_operand.<no memory space> [shape: f32[1,1], index: 6, kind: input, shape index: {}]
  %s7 = inlined_call_operand.vmem [shape: f32[8,1], index: 7, kind: output, shape index: {}]
  %s8 = sld [smem:[#allocation0]]
  $region50: #{tpu_custom_call.1} parent=0
    _
  %s10 = ssub.s32 1, %s8
  %s11 = scalar_select 0, %s10, %s8
  %v12 = vstv %s6
  %13 = vst [vmem:[#allocation2] sm:$0x1] %v12
  $region1: #{tpu_custom_call.1} parent=0
    #allocation3 [shape = 'u8[4096]{0}', space=vmem, size = 0x1000, scoped, tag = 'input window, operand 0, single buffered']
    #allocation4 [shape = 's32[1]{0}', space=sflag, size = 0x4, scoped, tag = 'scoped memory for tpu_custom_call.1']
    #allocation5 [shape = 'u8[16384]{0}', space=vmem, size = 0x4000, scoped, tag = 'input window, operand 1, single buffered']
    #allocation6 [shape = 's32[1]{0}', space=sflag, size = 0x4, scoped, tag = 'scoped memory for tpu_custom_call.1']
    #allocation7 [shape = 'u8[65536]{0}', space=vmem, size = 0x10000, scoped, tag = 'input window, operand 3, single buffered']
    %14 = vsyncpa [#allocation4], 0
    %15 = vsyncpa [#allocation6], 0
    // Predicated region
    $region2: #{tpu_custom_call.1} parent=1 // pred_check
      _
    $region3: #{tpu_custom_call.1} parent=1 // pred_check_branch
      %17 = sbr.rel (0) target = $region5
    $region4: #{tpu_custom_call.1} parent=1 // pred_region
      %19 = vsyncadd [#allocation4], 0
      %s21 = sshll.u32 %s0, 4
      %s22 = int_to_ptr.hbm [resolvable:$true] %s21
      %s23 = sshll.u32 [#allocation3], 4
      %s24 = int_to_ptr.vmem [resolvable:$true] %s23
      %26 = dma.hbm_to_vmem [thread:$0]  %s22, 128, %s24, [#allocation4]
    $region5: #{tpu_custom_call.1} parent=1 // pred_fallthru
      _
    // Predicated region
    $region6: #{tpu_custom_call.1} parent=1 // pred_check
      _
    $region7: #{tpu_custom_call.1} parent=1 // pred_check_branch
      %28 = sbr.rel (0) target = $region9
    $region8: #{tpu_custom_call.1} parent=1 // pred_region
      %30 = vsyncadd [#allocation6], 0
      %s31 = sshll.u32 %s1, 4
      %s32 = int_to_ptr.hbm [resolvable:$true] %s31
      %s33 = sshll.u32 [#allocation5], 4
      %s34 = int_to_ptr.vmem [resolvable:$true] %s33
      %39 = dma.hbm_to_vmem [thread:$0]  %s32, 512, %s34, [#allocation6], 128, 128, 8
    $region9: #{tpu_custom_call.1} parent=1 // pred_fallthru
      _
    // Predicated region
    $region10: #{tpu_custom_call.1} parent=1 // pred_check
      _
    $region11: #{tpu_custom_call.1} parent=1 // pred_check_branch
      %41 = sbr.rel (0) target = $region13
    $region12: #{tpu_custom_call.1} parent=1 // pred_region
      _
    $region13: #{tpu_custom_call.1} parent=1 // pred_fallthru
      _
    // Predicated region
    $region14: #{tpu_custom_call.1} parent=1 // pred_check
      _
    $region15: #{tpu_custom_call.1} parent=1 // pred_check_branch
      %43 = sbr.rel (0) target = $region17
    $region16: #{tpu_custom_call.1} parent=1 // pred_region
      %45 = vsyncadd [#allocation6], 0
      %s46 = sshll.u32 %s3, 4
      %s47 = int_to_ptr.hbm [resolvable:$true] %s46
      %s48 = sshll.u32 [#allocation7], 4
      %s49 = int_to_ptr.vmem [resolvable:$true] %s48
      %54 = dma.hbm_to_vmem [thread:$0]  %s47, 2048, %s49, [#allocation6], 128, 128, 8
    $region17: #{tpu_custom_call.1} parent=1 // pred_fallthru
      _
    // Predicated region
    $region18: #{tpu_custom_call.1} parent=1 // pred_check
      _
    $region19: #{tpu_custom_call.1} parent=1 // pred_check_branch
      %56 = sbr.rel (0) target = $region21
    $region20: #{tpu_custom_call.1} parent=1 // pred_region
      _
    $region21: #{tpu_custom_call.1} parent=1 // pred_fallthru
      _
    // Predicated region
    $region22: #{tpu_custom_call.1} parent=1 // pred_check
      _
    $region23: #{tpu_custom_call.1} parent=1 // pred_check_branch
      %58 = sbr.rel (0) target = $region25
    $region24: #{tpu_custom_call.1} parent=1 // pred_region
      _
    $region25: #{tpu_custom_call.1} parent=1 // pred_fallthru
      _
    // Predicated region
    $region26: #{tpu_custom_call.1} parent=1 // pred_check
      _
    $region27: #{tpu_custom_call.1} parent=1 // pred_check_branch
      %60 = sbr.rel (0) target = $region29
    $region28: #{tpu_custom_call.1} parent=1 // pred_region
      _
    $region29: #{tpu_custom_call.1} parent=1 // pred_fallthru
      _
    // Predicated region
    $region30: #{tpu_custom_call.1} parent=1 // pred_check
      _
    $region31: #{tpu_custom_call.1} parent=1 // pred_check_branch
      %62 = sbr.rel (0) target = $region33
    $region32: #{tpu_custom_call.1} parent=1 // pred_region
      %64 = dma.done [#allocation4], 128
    $region33: #{tpu_custom_call.1} parent=1 // pred_fallthru
      _
    // Predicated region
    $region34: #{tpu_custom_call.1} parent=1 // pred_check
      _
    $region35: #{tpu_custom_call.1} parent=1 // pred_check_branch
      %66 = sbr.rel (0) target = $region37
    $region36: #{tpu_custom_call.1} parent=1 // pred_region
      %68 = dma.done [#allocation6], 512
    $region37: #{tpu_custom_call.1} parent=1 // pred_fallthru
      _
    // Predicated region
    $region38: #{tpu_custom_call.1} parent=1 // pred_check
      _
    $region39: #{tpu_custom_call.1} parent=1 // pred_check_branch
      %70 = sbr.rel (0) target = $region41
    $region40: #{tpu_custom_call.1} parent=1 // pred_region
      %72 = dma.done [#allocation6], 2048
    $region41: #{tpu_custom_call.1} parent=1 // pred_fallthru
      _
    %v73 = vld [vmem:[#allocation3] sm:$0xff]
    %v74 = vld [vmem:[#allocation5] sm:$0xff]
    %v75 = vld [vmem:[#allocation5 + $0x8] sm:$0xff]
    %v76 = vld [vmem:[#allocation5 + $0x10] sm:$0xff]
    %v77 = vld [vmem:[#allocation5 + $0x18] sm:$0xff]
    %v78 = vld [vmem:[%s2] sm:$0x1]
    %v80 = vperm.slane %v78, 0
    %vm82 = vcmask 261120
    %v84 = vsel %vm82, %v73, 0
    %86 = vmatpush.msra.mxu0 0.0
    %87 = vmatpush.msra.mxu0 0.0
    %88 = vmatpush.msra.mxu0 0.0
    %89 = vmatpush.msra.mxu0 0.0
    %90 = vmatpush.msra.mxu0 0.0
    %91 = vmatpush.msra.mxu0 0.0
    %92 = vmatpush.msra.mxu0 0.0
    %93 = vmatpush.msra.mxu0 0.0
    %94 = vmatpush.msra.mxu0 0.0
    %95 = vmatpush.msra.mxu0 0.0
    %96 = vmatpush.msra.mxu0 0.0
    %97 = vmatpush.msra.mxu0 0.0
    %98 = vmatpush.msra.mxu0 %v77
    %99 = vmatpush.msra.mxu0 %v76
    %100 = vmatpush.msra.mxu0 %v75
    %101 = vmatpush.msra.mxu0 %v74
    %102 = vmatmul.f32.gmra.mxu0 %v84
    %v103 = vpop.f32.mrf.mxu0
    %v104 = vadd.f32 %v80, %v103
    %105 = vdwg.mxu0
    %v106 = vmax.f32 %v104, 0.0
    %v107 = vld [vmem:[#allocation7] sm:$0xff]
    %v108 = vld [vmem:[#allocation7 + $0x8] sm:$0xff]
    %v109 = vld [vmem:[#allocation7 + $0x10] sm:$0xff]
    %v110 = vld [vmem:[#allocation7 + $0x18] sm:$0xff]
    %v111 = vld [vmem:[#allocation7 + $0x20] sm:$0xff]
    %v112 = vld [vmem:[#allocation7 + $0x28] sm:$0xff]
    %v113 = vld [vmem:[#allocation7 + $0x30] sm:$0xff]
    %v114 = vld [vmem:[#allocation7 + $0x38] sm:$0xff]
    %v115 = vld [vmem:[#allocation7 + $0x40] sm:$0xff]
    %v116 = vld [vmem:[#allocation7 + $0x48] sm:$0xff]
    %v117 = vld [vmem:[#allocation7 + $0x50] sm:$0xff]
    %v118 = vld [vmem:[#allocation7 + $0x58] sm:$0xff]
    %v119 = vld [vmem:[#allocation7 + $0x60] sm:$0xff]
    %v120 = vld [vmem:[#allocation7 + $0x68] sm:$0xff]
    %v121 = vld [vmem:[#allocation7 + $0x70] sm:$0xff]
    %v122 = vld [vmem:[#allocation7 + $0x78] sm:$0xff]
    %v123 = vld [vmem:[%s4] sm:$0x1]
    %v125 = vperm.slane %v123, 0
    %127 = vmatpush.msra.mxu0 %v122
    %128 = vmatpush.msra.mxu0 %v121
    %129 = vmatpush.msra.mxu0 %v120
    %130 = vmatpush.msra.mxu0 %v119
    %131 = vmatpush.msra.mxu0 %v118
    %132 = vmatpush.msra.mxu0 %v117
    %133 = vmatpush.msra.mxu0 %v116
    %134 = vmatpush.msra.mxu0 %v115
    %135 = vmatpush.msra.mxu0 %v114
    %136 = vmatpush.msra.mxu0 %v113
    %137 = vmatpush.msra.mxu0 %v112
    %138 = vmatpush.msra.mxu0 %v111
    %139 = vmatpush.msra.mxu0 %v110
    %140 = vmatpush.msra.mxu0 %v109
    %141 = vmatpush.msra.mxu0 %v108
    %142 = vmatpush.msra.mxu0 %v107
    %143 = vmatmul.f32.gmra.mxu0 %v106
    %v144 = vpop.f32.mrf.mxu0
    %v145 = vadd.f32 %v125, %v144
    %146 = vdwg.mxu0
    %v147 = vmax.f32 %v145, 0.0
    %v148 = vld [vmem:[%s5] sm:$0x1]
    %v149 = vld [vmem:[#allocation2] sm:$0x1]
    %v151 = vperm.slane %v148, 0
    %v153 = vmul.f32 %v147, %v151
    %154 = vadd.xlane.f32.xlu0 %v153
    %v155 = vpop.xlane.xlu0 %154
    %v157 = vperm.slane %v149, 0
    %v159 = vadd.f32 %v155, %v157
    %v160 = vxor.u32 %v159, 2147483648
    %v161 = vmul.f32 %v160, 1.442695
    %v162 = vpow.pop %v161
    %v163 = vadd.f32 %v162, 1.0
    %v164 = vrcp.pop %v163
    %v165 = vmul.f32 %v163, %v164
    %v166 = vsub.f32 1.0, %v165
    %v167 = vmul.f32 %v164, %v166
    %v168 = vadd.f32 %v164, %v167
    %vm169 = vweird.f32 %v163
    %vm170 = vweird.f32 %v164
    %vm171 = vmor %vm169, %vm170
    %v172 = vsel %vm171, %v164, %v168
    %v173 = vand.u32 2147483647, %v163
    %vm174 = vcmp.eq.f32.partialorder %v173, 8.507059e+37
    %v175 = vand.u32 %v163, 2147483648
    %v176 = vor.u32 1.1754944e-38, %v175
    %v177 = vsel %vm174, %v176, %v172
    %v178 = vmul.f32 1.0, %v177
    %vm179 = vcmask 7168
    %180 = vst.msk [vmem:[%s7] sm:$0xff] %vm179, %v178
    // Predicated region
    $region42: #{tpu_custom_call.1} parent=1 // pred_check
      _
    $region43: #{tpu_custom_call.1} parent=1 // pred_check_branch
      %182 = sbr.rel (0) target = $region45
    $region44: #{tpu_custom_call.1} parent=1 // pred_region
      _
    $region45: #{tpu_custom_call.1} parent=1 // pred_fallthru
      _
    // Predicated region
    $region46: #{tpu_custom_call.1} parent=1 // pred_check
      _
    $region47: #{tpu_custom_call.1} parent=1 // pred_check_branch
      %184 = sbr.rel (0) target = $region49
    $region48: #{tpu_custom_call.1} parent=1 // pred_region
      _
    $region49: #{tpu_custom_call.1} parent=1 // pred_fallthru
      _
    %185 = vsyncpa [#allocation4], 1
    %186 = vsyncpa [#allocation6], 1

</llo_original>
